<compile_context>
chip_gen: v7x
topology: tpu7x:2x2x1
jax: 0.10.0
libtpu: 0.0.40
codegen_flags: <defaults>
</compile_context>

<pallas_src>
import jax
import jax.numpy as jnp
from jax.experimental import pallas as pl
from jax.experimental.pallas import tpu as pltpu

# ---- packed parameter slab layout ((16, 128) f32) ---------------------------
#   rows 0..7  : w1^T augmented  (8 hidden x 16 K):
#                  [h<5, k<10]  = w1[k, h]
#                  [h<5, k=10]  = b1[h]          (folded bias; x row 10 is 1.0)
#                  [h=5, k=10]  = 1.0             (carries b2 through ReLU)
#                  everything else 0
#   rows 8..15 : w2 augmented, pre-broadcast across all 128 lanes:
#                  row 8+h = w2[h] for h<5, b2 for h=5, 0 for h=6,7
_K_AUG = 16          # 10 real features + 1 ones-row (bias) + 5 zero pad
_H_PAD = 8           # 5 real hidden units + 1 b2-carry + 2 zero pad
_ONES_ROW = 10       # row of x^T that is all 1.0
_B2_UNIT = 5         # padded hidden unit that carries b2
_SLAB_LANES = 128
_LANE_BLK = 128      # batch lanes per grid step


def simplenet_kernel(xt_ref, p_ref, o_ref):
    params = p_ref[...]                            # (16, 128): exactly 2 vregs
    w1t = params[0:_H_PAD, 0:_K_AUG]               # (8, 16)   vreg-0, fc1^T (+b1,+b2 carry)
    w2b = params[_H_PAD:2 * _H_PAD, :]             # (8, 128)  vreg-1, w2 pre-broadcast

    # fc1 (+biases) on the MXU, transposed: hidden on sublanes, batch on lanes.
    ht = jnp.dot(w1t, xt_ref[...], preferred_element_type=jnp.float32)  # (8, 128)
    ht = jnp.maximum(ht, 0.0)

    # fc2 (+b2): single-vreg VPU multiply + 8-sublane reduce -> lane-dense (1, 128).
    o_ref[...] = jnp.sum(ht * w2b, axis=0, keepdims=True).astype(o_ref.dtype)


def pack_params(w1, b1, w2, b2):
    """w1 (10,5), b1 (5,), w2 (5,1), b2 (1,)  ->  one (16,128) f32 slab."""
    w1t_aug = jnp.zeros((_H_PAD, _K_AUG), jnp.float32)
    w1t_aug = w1t_aug.at[0:5, 0:10].set(w1.T.astype(jnp.float32))
    w1t_aug = w1t_aug.at[0:5, _ONES_ROW].set(b1.astype(jnp.float32))   # fold b1
    w1t_aug = w1t_aug.at[_B2_UNIT, _ONES_ROW].set(1.0)                 # unit 5 == 1.0

    w2_aug = jnp.zeros((_H_PAD,), jnp.float32)
    w2_aug = w2_aug.at[0:5].set(w2[:, 0].astype(jnp.float32))
    w2_aug = w2_aug.at[_B2_UNIT].set(b2[0].astype(jnp.float32))        # fold b2

    slab = jnp.zeros((2 * _H_PAD, _SLAB_LANES), jnp.float32)
    slab = slab.at[0:_H_PAD, 0:_K_AUG].set(w1t_aug)
    slab = slab.at[_H_PAD:2 * _H_PAD, :].set(
        jnp.broadcast_to(w2_aug[:, None], (_H_PAD, _SLAB_LANES)))
    return slab


@jax.jit
def simplenet_forward(x, param_slab):
    """x: (B, 10) float32. Returns (B, 1) float32."""
    B, _ = x.shape
    B_pad = pl.cdiv(B, _LANE_BLK) * _LANE_BLK

    # x^T augmented/padded: rows 0..9 = x^T, row 10 = 1.0 (bias lane), rest 0.
    # `base` depends only on static shapes -> constant-folded under jit.
    base = jnp.zeros((_K_AUG, B_pad), jnp.float32).at[_ONES_ROW, :].set(1.0)
    xt_pad = jax.lax.dynamic_update_slice(base, x.T.astype(jnp.float32), (0, 0))

    flops = 2 * _H_PAD * _K_AUG * B_pad + 3 * _H_PAD * B_pad
    bytes_accessed = 4 * (xt_pad.size + param_slab.size + B_pad)

    yt = pl.pallas_call(
        simplenet_kernel,
        out_shape=jax.ShapeDtypeStruct((1, B_pad), jnp.float32),
        grid=(B_pad // _LANE_BLK,),
        in_specs=[
            pl.BlockSpec((_K_AUG, _LANE_BLK), lambda i: (0, i)),
            pl.BlockSpec((2 * _H_PAD, _SLAB_LANES), lambda i: (0, 0)),
        ],
        out_specs=pl.BlockSpec((1, _LANE_BLK), lambda i: (0, i)),
        compiler_params=pltpu.CompilerParams(
            dimension_semantics=("parallel",)),
        cost_estimate=pl.CostEstimate(
            flops=flops, transcendentals=0, bytes_accessed=bytes_accessed),
    )(xt_pad, param_slab)

    # Padded batch lanes carry relu(b1)·w2 + b2; the [:B] slice removes them.
    return yt[0, :B, None]


def init_params(key):
    """PyTorch nn.Linear-style init: uniform(-1/sqrt(fan_in), 1/sqrt(fan_in)).

    Returns kernel-layout params: w1 (10,5), b1 (5,), w2 (5,1), b2 (1,).
    """
    k1, k2, k3, k4 = jax.random.split(key, 4)
    bound1 = 1.0 / jnp.sqrt(10.0)
    bound2 = 1.0 / jnp.sqrt(5.0)
    w1_t = jax.random.uniform(k1, (5, 10), jnp.float32, -bound1, bound1)  # torch layout
    b1 = jax.random.uniform(k2, (5,), jnp.float32, -bound1, bound1)
    w2_t = jax.random.uniform(k3, (1, 5), jnp.float32, -bound2, bound2)   # torch layout
    b2 = jax.random.uniform(k4, (1,), jnp.float32, -bound2, bound2)
    return (w1_t.T, b1, w2_t.T, b2)


if __name__ == "__main__":
    key = jax.random.PRNGKey(0)
    kx, kp = jax.random.split(key)
    B = 100                                   # matches x = torch.randn(100, 10)
    x = jax.random.normal(kx, (B, 10), jnp.float32)
    w1, b1, w2, b2 = init_params(kp)
    slab = pack_params(w1, b1, w2, b2)

    out = simplenet_forward(x, slab)
    out = jax.block_until_ready(out)

    # sanity check against plain-JAX reference
    ref = jnp.maximum(x @ w1 + b1[None, :], 0.0) @ w2 + b2[None, :]
    assert out.shape == (B, 1)
    assert jnp.allclose(out, ref, atol=1e-5, rtol=1e-5)
    print("KERNEL_OK")
</pallas_src>

<mosaic_0001>
module attributes {stable_mosaic.version = 11 : i64} {
  func.func @simplenet_kernel(%arg0: i32, %arg1: memref<16x128xf32, #tpu.memory_space<vmem>>, %arg2: memref<16x128xf32, #tpu.memory_space<vmem>>, %arg3: memref<1x128xf32, #tpu.memory_space<vmem>>) attributes {dimension_semantics = [#tpu.dimension_semantics<parallel>], iteration_bounds = array<i64: 1>, scalar_prefetch = 0 : i64, scratch_operands = 0 : i64, tpu.core_type = #tpu.core_type<tc>, window_params = [{transform_indices = @transform_0, window_bounds = array<i64: 16, 128>}, {pipeline_mode = #tpu.pipeline_mode<synchronous>, transform_indices = @transform_1, window_bounds = array<i64: 16, 128>}, {transform_indices = @transform_2, window_bounds = array<i64: 1, 128>}]} {
    %c0 = arith.constant 0 : index
    %c0_0 = arith.constant 0 : index
    %0 = vector.load %arg2[%c0, %c0_0] : memref<16x128xf32, #tpu.memory_space<vmem>>, vector<16x128xf32>
    %1 = vector.extract_strided_slice %0 {offsets = [0, 0], sizes = [8, 16], strides = [1, 1]} : vector<16x128xf32> to vector<8x16xf32>
    %2 = vector.extract_strided_slice %0 {offsets = [8, 0], sizes = [8, 128], strides = [1, 1]} : vector<16x128xf32> to vector<8x128xf32>
    %c0_1 = arith.constant 0 : index
    %c0_2 = arith.constant 0 : index
    %3 = vector.load %arg1[%c0_1, %c0_2] : memref<16x128xf32, #tpu.memory_space<vmem>>, vector<16x128xf32>
    %cst = arith.constant dense<0.000000e+00> : vector<8x128xf32>
    %4 = tpu.matmul %1, %3, %cst {dimension_numbers = #tpu.dot_dimension_numbers<[1], [0], [0], [1], [0, 0, 1, 1], [], []>} : vector<8x16xf32>, vector<16x128xf32>, vector<8x128xf32> -> vector<8x128xf32>
    %cst_3 = arith.constant 0.000000e+00 : f32
    %5 = vector.broadcast %cst_3 : f32 to vector<8x128xf32>
    %6 = arith.maximumf %4, %5 : vector<8x128xf32>
    %7 = arith.mulf %6, %2 : vector<8x128xf32>
    %cst_4 = arith.constant dense<0.000000e+00> : vector<128xf32>
    %8 = vector.multi_reduction <add>, %7, %cst_4 [0] : vector<8x128xf32> to vector<128xf32>
    %9 = vector.shape_cast %8 : vector<128xf32> to vector<1x128xf32>
    %c0_5 = arith.constant 0 : index
    %c0_6 = arith.constant 0 : index
    %10 = vector.load %arg3[%c0_5, %c0_6] : memref<1x128xf32, #tpu.memory_space<vmem>>, vector<1x128xf32>
    tpu.vector_store %arg3[%c0_5, %c0_6], %9 {strides = array<i32>} : memref<1x128xf32, #tpu.memory_space<vmem>>, vector<1x128xf32>,
    return
  }
  func.func @transform_0(%arg0: i32) -> (i32, i32) {
    %c0_i32 = arith.constant 0 : i32
    %c0_i32_0 = arith.constant 0 : i32
    return %c0_i32, %arg0 : i32, i32
  }
  func.func @transform_1(%arg0: i32) -> (i32, i32) {
    %c0_i32 = arith.constant 0 : i32
    %c0_i32_0 = arith.constant 0 : i32
    %c0_i32_1 = arith.constant 0 : i32
    return %c0_i32, %c0_i32_0 : i32, i32
  }
  func.func @transform_2(%arg0: i32) -> (i32, i32) {
    %c0_i32 = arith.constant 0 : i32
    %c0_i32_0 = arith.constant 0 : i32
    return %c0_i32, %arg0 : i32, i32
  }
}

</mosaic_0001>

<llo_original>
// kernel: simplenet_forward.1
$region0: #{simplenet_forward.1}
  #allocation0 [shape = 'u32[]', space=smem, size = 0x4, offset = 0x4, fixed_abs, tag = 'smem constant byte address 0x4 - core index']
  #allocation1 [shape = 'u32[144,128]{1,0:T(1,128)}', space=vmem, size = 0x12000, scoped, tag = 'internal scratch']
  %s0 = inlined_call_operand.vmem [shape: f32[16,128], index: 0, kind: input, shape index: {}]
  %s1 = inlined_call_operand.vmem [shape: f32[16,128], index: 1, kind: input, shape index: {}]
  %s2 = inlined_call_operand.vmem [shape: f32[1,128], index: 2, kind: output, shape index: {}]
  %s3 = sld [smem:[#allocation0]]
  $region18: #{simplenet_forward.1} parent=0
    _
  %s5 = ssub.s32 1, %s3
  %s6 = scalar_select 0, %s5, %s3
  // Predicated region
  $region2: #{simplenet_forward.1} parent=0 // pred_check
    _
  $region3: #{simplenet_forward.1} parent=0 // pred_check_branch
    %8 = sbr.rel (0) target = $region5
  $region4: #{simplenet_forward.1} parent=0 // pred_region
    _
  $region5: #{simplenet_forward.1} parent=0 // pred_fallthru
    _
  // Predicated region
  $region6: #{simplenet_forward.1} parent=0 // pred_check
    _
  $region7: #{simplenet_forward.1} parent=0 // pred_check_branch
    %10 = sbr.rel (0) target = $region9
  $region8: #{simplenet_forward.1} parent=0 // pred_region
    _
  $region9: #{simplenet_forward.1} parent=0 // pred_fallthru
    _
  %v11 = vld [vmem:[%s1] sm:$0xff]
  %v12 = vld [vmem:[%s1 + $0x8] sm:$0xff]
  %v13 = vld [vmem:[%s0] sm:$0xff]
  %v14 = vld [vmem:[%s0 + $0x8] sm:$0xff]
  %vm15 = vcmask 130048
  %v17 = vsel %vm15, %v11, 0
  %19 = vmatprep.subr.mxu0 0.0
  %20 = vmatpush1.msra.mxu0 %v13
  %21 = vmatprep.subr.mxu0 0.0
  %22 = vmatpush1.msra.mxu0 %v14
  %23 = vmatprep.subr.mxu0 0.0
  %24 = vmatpush1.msra.mxu0 0.0
  %25 = vmatprep.subr.mxu0 0.0
  %26 = vmatpush1.msra.mxu0 0.0
  %27 = vmatprep.subr.mxu0 0.0
  %28 = vmatpush1.msra.mxu0 0.0
  %29 = vmatprep.subr.mxu0 0.0
  %30 = vmatpush1.msra.mxu0 0.0
  %31 = vmatprep.subr.mxu0 0.0
  %32 = vmatpush1.msra.mxu0 0.0
  %33 = vmatprep.subr.mxu0 0.0
  %34 = vmatpush1.msra.mxu0 0.0
  %35 = vmatprep.subr.mxu0 0.0
  %36 = vmatpush1.msra.mxu0 0.0
  %37 = vmatprep.subr.mxu0 0.0
  %38 = vmatpush1.msra.mxu0 0.0
  %39 = vmatprep.subr.mxu0 0.0
  %40 = vmatpush1.msra.mxu0 0.0
  %41 = vmatprep.subr.mxu0 0.0
  %42 = vmatpush1.msra.mxu0 0.0
  %43 = vmatprep.subr.mxu0 0.0
  %44 = vmatpush1.msra.mxu0 0.0
  %45 = vmatprep.subr.mxu0 0.0
  %46 = vmatpush1.msra.mxu0 0.0
  %47 = vmatprep.subr.mxu0 0.0
  %48 = vmatpush1.msra.mxu0 0.0
  %49 = vmatprep.subr.mxu0 0.0
  %50 = vmatpush1.msra.mxu0 0.0
  %51 = vmatprep.subr.mxu0 0.0
  %52 = vmatpush1.msra.mxu0 0.0
  %53 = vmatprep.subr.mxu0 0.0
  %54 = vmatpush1.msra.mxu0 0.0
  %55 = vmatprep.subr.mxu0 0.0
  %56 = vmatpush1.msra.mxu0 0.0
  %57 = vmatprep.subr.mxu0 0.0
  %58 = vmatpush1.msra.mxu0 0.0
  %59 = vmatprep.subr.mxu0 0.0
  %60 = vmatpush1.msra.mxu0 0.0
  %61 = vmatprep.subr.mxu0 0.0
  %62 = vmatpush1.msra.mxu0 0.0
  %63 = vmatprep.subr.mxu0 0.0
  %64 = vmatpush1.msra.mxu0 0.0
  %65 = vmatprep.subr.mxu0 0.0
  %66 = vmatpush1.msra.mxu0 0.0
  %67 = vmatprep.subr.mxu0 0.0
  %68 = vmatpush1.msra.mxu0 0.0
  %69 = vmatprep.subr.mxu0 0.0
  %70 = vmatpush1.msra.mxu0 0.0
  %71 = vmatprep.subr.mxu0 0.0
  %72 = vmatpush1.msra.mxu0 0.0
  %73 = vmatprep.subr.mxu0 0.0
  %74 = vmatpush1.msra.mxu0 0.0
  %75 = vmatprep.subr.mxu0 0.0
  %76 = vmatpush1.msra.mxu0 0.0
  %77 = vmatprep.subr.mxu0 0.0
  %78 = vmatpush1.msra.mxu0 0.0
  %79 = vmatprep.subr.mxu0 0.0
  %80 = vmatpush1.msra.mxu0 0.0
  %81 = vmatprep.subr.mxu0 0.0
  %82 = vmatpush1.msra.mxu0 0.0
  %83 = vmatprep.mubr.f32.mxu0 0.0
  %84 = vmatmul.mubr.f32.gmra.mrb[0].mxu0 %v17
  %v85 = vpop.f32.mrb[0].mxu0
  %v86 = vadd.f32 0.0, %v85
  %v87 = vpop.f32.mrb[0].mxu0
  %88 = vdwg.mxu0
  %v89 = vmax.f32 %v86, 0.0
  %v90 = vmul.f32 %v89, %v12
  %v91 = vrot.slane %v90, 4
  %v92 = vadd.f32 %v90, %v91
  %v93 = vrot.slane %v92, 2
  %v94 = vadd.f32 %v92, %v93
  %v95 = vrot.slane %v94, 1
  %v96 = vadd.f32 %v94, %v95
  %97 = vst [vmem:[%s2] sm:$0x1] %v96
  // Predicated region
  $region10: #{simplenet_forward.1} parent=0 // pred_check
    _
  $region11: #{simplenet_forward.1} parent=0 // pred_check_branch
    %99 = sbr.rel (0) target = $region13
  $region12: #{simplenet_forward.1} parent=0 // pred_region
    _
  $region13: #{simplenet_forward.1} parent=0 // pred_fallthru
    _
  // Predicated region
  $region14: #{simplenet_forward.1} parent=0 // pred_check
    _
  $region15: #{simplenet_forward.1} parent=0 // pred_check_branch
    %101 = sbr.rel (0) target = $region17
  $region16: #{simplenet_forward.1} parent=0 // pred_region
    _
  $region17: #{simplenet_forward.1} parent=0 // pred_fallthru
    _

</llo_original>
